<compile_context>
chip_gen: v5e
topology: v5e:2x2
jax: 0.10.0
libtpu: 0.0.40
codegen_flags: <defaults>
</compile_context>

<pallas_src>
import math

import jax
import jax.numpy as jnp
from jax.experimental import pallas as pl
from jax.experimental.pallas import tpu as pltpu

DROPOUT_P = 0.2
_KEEP = 1.0 - DROPOUT_P
_INV_KEEP = 1.0 / _KEEP
# 16-bit integer dropout threshold: keep iff bits16 < 0.8 * 2^16 (bias < 2^-16).
_KEEP_THRESH_16 = int(_KEEP * (1 << 16))

_LANE = 128
_COLS = 4 * _LANE  # 512: lane-dense tile width for the generalized path


def _mix32(x):
    """lowbias32-style stateless 32-bit hash (counter-based PRNG), uint32 in/out."""
    x = x ^ (x >> 16)
    x = x * jnp.uint32(0x7FEB352D)
    x = x ^ (x >> 15)
    x = x * jnp.uint32(0x846CA68B)
    x = x ^ (x >> 16)
    return x


def _dropout_rand_dropout_kernel(seed_ref, x_ref, o_ref):
    shape = x_ref.shape
    tile_elems = math.prod(shape)
    strides = pl.strides_from_shape(shape)

    # Unique global element counter per element (hoisted: computed once per tile).
    idx = jax.lax.broadcasted_iota(jnp.int32, shape, 0) * strides[0]
    for axis in range(1, len(shape)):
        idx = idx + jax.lax.broadcasted_iota(jnp.int32, shape, axis) * strides[axis]
    idx = (idx + pl.program_id(0) * tile_elems).astype(jnp.uint32)

    seed = seed_ref[0].astype(jnp.uint32)
    # Two decorrelated streams (multiplicative re-key); only TWO hashes/element:
    #   h_mask -> split into two 16-bit fields (dropout mask 1 and mask 2)
    #   h_unif -> 24-bit uniform for x3
    base_mask = seed * jnp.uint32(0x9E3779B9)
    base_unif = (seed ^ jnp.uint32(0x85EBCA6B)) * jnp.uint32(0xC2B2AE35)
    h_mask = _mix32(base_mask + idx)
    h_unif = _mix32(base_unif + idx)

    thresh = jnp.uint32(_KEEP_THRESH_16)
    keep1 = (h_mask & jnp.uint32(0xFFFF)) < thresh
    keep2 = (h_mask >> 16) < thresh

    x1 = x_ref[...]
    # x2 = dropout(x1, p): integer-threshold keep mask + where (no mask multiply).
    x2 = jnp.where(keep1, x1 * jnp.float32(_INV_KEEP), jnp.float32(0.0))
    # x3 = rand_like(...): uniform in [0, 1). The dead first torch draw is omitted;
    # with a stateless counter-based PRNG it cannot influence later values.
    x3 = (h_unif >> 8).astype(jnp.int32).astype(jnp.float32) * jnp.float32(1.0 / (1 << 24))
    # x4 = dropout(x2 + x3, p)
    o_ref[...] = jnp.where(keep2, (x2 + x3) * jnp.float32(_INV_KEEP), jnp.float32(0.0))


def _call_full_array(x, seed_arr):
    """Tiny / irregular payloads: single full-array block, native shape (no copies)."""
    ndim = x.ndim
    grid_spec = pltpu.PrefetchScalarGridSpec(
        num_scalar_prefetch=1,
        grid=(1,),
        in_specs=[pl.BlockSpec(x.shape, lambda i, seed: (0,) * ndim)],
        out_specs=pl.BlockSpec(x.shape, lambda i, seed: (0,) * ndim),
    )
    return pl.pallas_call(
        _dropout_rand_dropout_kernel,
        out_shape=jax.ShapeDtypeStruct(x.shape, jnp.float32),
        grid_spec=grid_spec,
        compiler_params=pltpu.CompilerParams(dimension_semantics=("arbitrary",)),
    )(seed_arr, x)


def _call_tiled(x2d, seed_arr, tile_rows):
    """Lane-dense path for realistic sizes: (rows, 512) f32, row-tiled, parallel grid."""
    rows, cols = x2d.shape
    grid_spec = pltpu.PrefetchScalarGridSpec(
        num_scalar_prefetch=1,
        grid=(rows // tile_rows,),
        in_specs=[pl.BlockSpec((tile_rows, cols), lambda i, seed: (i, 0))],
        out_specs=pl.BlockSpec((tile_rows, cols), lambda i, seed: (i, 0)),
    )
    return pl.pallas_call(
        _dropout_rand_dropout_kernel,
        out_shape=jax.ShapeDtypeStruct((rows, cols), jnp.float32),
        grid_spec=grid_spec,
        compiler_params=pltpu.CompilerParams(dimension_semantics=("parallel",)),
    )(seed_arr, x2d)


def model_forward(x1, seed=0):
    """Fused dropout -> rand_like -> add -> dropout in a single Pallas kernel."""
    if x1.dtype != jnp.float32:
        x1 = x1.astype(jnp.float32)
    seed_arr = jnp.array([seed], dtype=jnp.int32)
    n = x1.size

    # Generalized lane-dense path: view payload as (rows, 512) so stores are
    # unmasked vst and row-tiles shard across cores; blocks capped at 2 MiB.
    if n >= 8 * _COLS and n % (8 * _COLS) == 0:
        rows = n // _COLS
        tile_rows = next(t for t in (1024, 512, 256, 128, 64, 32, 16, 8) if rows % t == 0)
        out = _call_tiled(x1.reshape(rows, _COLS), seed_arr, tile_rows)
        return out.reshape(x1.shape)

    # Tiny payload (the (1, 2, 2) spec input): launch overhead dominates;
    # pass the array in its native shape as one full-array block.
    return _call_full_array(x1, seed_arr)


if __name__ == "__main__":
    key = jax.random.PRNGKey(0)

    # Primary test: exact shape implied by the PyTorch module (torch.randn(1, 2, 2)).
    x1 = jax.random.normal(key, (1, 2, 2), dtype=jnp.float32)
    y = model_forward(x1, seed=0)
    jax.block_until_ready(y)
    assert y.shape == (1, 2, 2)
    assert y.dtype == jnp.float32
    assert bool(jnp.all(jnp.isfinite(y)))

    # Secondary sanity check of the generalized lane-dense / parallel-grid path.
    key2, _ = jax.random.split(key)
    x_big = jax.random.normal(key2, (2048, 512), dtype=jnp.float32)
    y_big = model_forward(x_big, seed=1)
    jax.block_until_ready(y_big)
    assert y_big.shape == (2048, 512)
    assert y_big.dtype == jnp.float32
    assert bool(jnp.all(jnp.isfinite(y_big)))

    print("KERNEL_OK")
</pallas_src>

<mosaic_0001>
module attributes {stable_mosaic.version = 11 : i64} {
  func.func @_dropout_rand_dropout_kernel(%arg0: i32, %arg1: memref<1xi32, #tpu.memory_space<smem>>, %arg2: memref<1x2x2xf32, #tpu.memory_space<vmem>>, %arg3: memref<1x2x2xf32, #tpu.memory_space<vmem>>) attributes {dimension_semantics = [#tpu.dimension_semantics<arbitrary>], iteration_bounds = array<i64: 1>, scalar_prefetch = 1 : i64, scratch_operands = 0 : i64, tpu.core_type = #tpu.core_type<tc>, window_params = [{pipeline_mode = #tpu.pipeline_mode<synchronous>, transform_indices = @transform_0, window_bounds = array<i64: 1, 2, 2>}, {pipeline_mode = #tpu.pipeline_mode<synchronous>, transform_indices = @transform_1, window_bounds = array<i64: 1, 2, 2>}]} {
    %0 = tpu.iota {dimensions = array<i32: 0>} : vector<1x2x2xi32>
    %c4_i32 = arith.constant 4 : i32
    %1 = vector.broadcast %c4_i32 : i32 to vector<1x2x2xi32>
    %2 = arith.muli %0, %1 : vector<1x2x2xi32>
    %3 = tpu.iota {dimensions = array<i32: 1>} : vector<1x2x2xi32>
    %c2_i32 = arith.constant 2 : i32
    %4 = vector.broadcast %c2_i32 : i32 to vector<1x2x2xi32>
    %5 = arith.muli %3, %4 : vector<1x2x2xi32>
    %6 = arith.addi %2, %5 : vector<1x2x2xi32>
    %7 = tpu.iota {dimensions = array<i32: 2>} : vector<1x2x2xi32>
    %c1_i32 = arith.constant 1 : i32
    %8 = vector.broadcast %c1_i32 : i32 to vector<1x2x2xi32>
    %9 = arith.muli %7, %8 : vector<1x2x2xi32>
    %10 = arith.addi %6, %9 : vector<1x2x2xi32>
    %c4_i32_0 = arith.constant 4 : i32
    %11 = arith.muli %arg0, %c4_i32_0 : i32
    %12 = vector.broadcast %11 : i32 to vector<1x2x2xi32>
    %13 = arith.addi %10, %12 : vector<1x2x2xi32>
    %c0 = arith.constant 0 : index
    %14 = memref.load %arg1[%c0] : memref<1xi32, #tpu.memory_space<smem>>
    %c-1640531527_i32 = arith.constant -1640531527 : i32
    %15 = arith.muli %14, %c-1640531527_i32 : i32
    %c-2048144789_i32 = arith.constant -2048144789 : i32
    %16 = arith.xori %14, %c-2048144789_i32 : i32
    %c-1028477387_i32 = arith.constant -1028477387 : i32
    %17 = arith.muli %16, %c-1028477387_i32 : i32
    %18 = vector.broadcast %15 : i32 to vector<1x2x2xi32>
    %19 = arith.addi %18, %13 : vector<1x2x2xi32>
    %c16_i32 = arith.constant 16 : i32
    %20 = vector.broadcast %c16_i32 : i32 to vector<1x2x2xi32>
    %21 = arith.shrui %19, %20 : vector<1x2x2xi32>
    %22 = arith.xori %19, %21 : vector<1x2x2xi32>
    %c2146121005_i32 = arith.constant 2146121005 : i32
    %23 = vector.broadcast %c2146121005_i32 : i32 to vector<1x2x2xi32>
    %24 = arith.muli %22, %23 : vector<1x2x2xi32>
    %c15_i32 = arith.constant 15 : i32
    %25 = vector.broadcast %c15_i32 : i32 to vector<1x2x2xi32>
    %26 = arith.shrui %24, %25 : vector<1x2x2xi32>
    %27 = arith.xori %24, %26 : vector<1x2x2xi32>
    %c-2073254261_i32 = arith.constant -2073254261 : i32
    %28 = vector.broadcast %c-2073254261_i32 : i32 to vector<1x2x2xi32>
    %29 = arith.muli %27, %28 : vector<1x2x2xi32>
    %c16_i32_1 = arith.constant 16 : i32
    %30 = vector.broadcast %c16_i32_1 : i32 to vector<1x2x2xi32>
    %31 = arith.shrui %29, %30 : vector<1x2x2xi32>
    %32 = arith.xori %29, %31 : vector<1x2x2xi32>
    %33 = vector.broadcast %17 : i32 to vector<1x2x2xi32>
    %34 = arith.addi %33, %13 : vector<1x2x2xi32>
    %c16_i32_2 = arith.constant 16 : i32
    %35 = vector.broadcast %c16_i32_2 : i32 to vector<1x2x2xi32>
    %36 = arith.shrui %34, %35 : vector<1x2x2xi32>
    %37 = arith.xori %34, %36 : vector<1x2x2xi32>
    %c2146121005_i32_3 = arith.constant 2146121005 : i32
    %38 = vector.broadcast %c2146121005_i32_3 : i32 to vector<1x2x2xi32>
    %39 = arith.muli %37, %38 : vector<1x2x2xi32>
    %c15_i32_4 = arith.constant 15 : i32
    %40 = vector.broadcast %c15_i32_4 : i32 to vector<1x2x2xi32>
    %41 = arith.shrui %39, %40 : vector<1x2x2xi32>
    %42 = arith.xori %39, %41 : vector<1x2x2xi32>
    %c-2073254261_i32_5 = arith.constant -2073254261 : i32
    %43 = vector.broadcast %c-2073254261_i32_5 : i32 to vector<1x2x2xi32>
    %44 = arith.muli %42, %43 : vector<1x2x2xi32>
    %c16_i32_6 = arith.constant 16 : i32
    %45 = vector.broadcast %c16_i32_6 : i32 to vector<1x2x2xi32>
    %46 = arith.shrui %44, %45 : vector<1x2x2xi32>
    %47 = arith.xori %44, %46 : vector<1x2x2xi32>
    %c65535_i32 = arith.constant 65535 : i32
    %48 = vector.broadcast %c65535_i32 : i32 to vector<1x2x2xi32>
    %49 = arith.andi %32, %48 : vector<1x2x2xi32>
    %c52428_i32 = arith.constant 52428 : i32
    %50 = vector.broadcast %c52428_i32 : i32 to vector<1x2x2xi32>
    %51 = arith.cmpi ult, %49, %50 : vector<1x2x2xi32>
    %c16_i32_7 = arith.constant 16 : i32
    %52 = vector.broadcast %c16_i32_7 : i32 to vector<1x2x2xi32>
    %53 = arith.shrui %32, %52 : vector<1x2x2xi32>
    %c52428_i32_8 = arith.constant 52428 : i32
    %54 = vector.broadcast %c52428_i32_8 : i32 to vector<1x2x2xi32>
    %55 = arith.cmpi ult, %53, %54 : vector<1x2x2xi32>
    %c0_9 = arith.constant 0 : index
    %c0_10 = arith.constant 0 : index
    %c0_11 = arith.constant 0 : index
    %56 = vector.load %arg2[%c0_9, %c0_10, %c0_11] : memref<1x2x2xf32, #tpu.memory_space<vmem>>, vector<1x2x2xf32>
    %cst = arith.constant 1.250000e+00 : f32
    %57 = vector.broadcast %cst : f32 to vector<1x2x2xf32>
    %58 = arith.mulf %56, %57 : vector<1x2x2xf32>
    %cst_12 = arith.constant 0.000000e+00 : f32
    %59 = vector.broadcast %cst_12 : f32 to vector<1x2x2xf32>
    %60 = arith.select %51, %58, %59 : vector<1x2x2xi1>, vector<1x2x2xf32>
    %c8_i32 = arith.constant 8 : i32
    %61 = vector.broadcast %c8_i32 : i32 to vector<1x2x2xi32>
    %62 = arith.shrui %47, %61 : vector<1x2x2xi32>
    %63 = arith.sitofp %62 : vector<1x2x2xi32> to vector<1x2x2xf32>
    %cst_13 = arith.constant 5.96046448E-8 : f32
    %64 = vector.broadcast %cst_13 : f32 to vector<1x2x2xf32>
    %65 = arith.mulf %63, %64 : vector<1x2x2xf32>
    %66 = arith.addf %60, %65 : vector<1x2x2xf32>
    %cst_14 = arith.constant 1.250000e+00 : f32
    %67 = vector.broadcast %cst_14 : f32 to vector<1x2x2xf32>
    %68 = arith.mulf %66, %67 : vector<1x2x2xf32>
    %cst_15 = arith.constant 0.000000e+00 : f32
    %69 = vector.broadcast %cst_15 : f32 to vector<1x2x2xf32>
    %70 = arith.select %55, %68, %69 : vector<1x2x2xi1>, vector<1x2x2xf32>
    %c0_16 = arith.constant 0 : index
    %c0_17 = arith.constant 0 : index
    %c0_18 = arith.constant 0 : index
    %71 = vector.load %arg3[%c0_16, %c0_17, %c0_18] : memref<1x2x2xf32, #tpu.memory_space<vmem>>, vector<1x2x2xf32>
    tpu.vector_store %arg3[%c0_16, %c0_17, %c0_18], %70 {strides = array<i32>} : memref<1x2x2xf32, #tpu.memory_space<vmem>>, vector<1x2x2xf32>,
    return
  }
  func.func @transform_0(%arg0: i32, %arg1: memref<1xi32, #tpu.memory_space<smem>>) -> (i32, i32, i32) {
    %c0_i32 = arith.constant 0 : i32
    %c0_i32_0 = arith.constant 0 : i32
    %c0_i32_1 = arith.constant 0 : i32
    %c0_i32_2 = arith.constant 0 : i32
    return %c0_i32, %c0_i32_0, %c0_i32_1 : i32, i32, i32
  }
  func.func @transform_1(%arg0: i32, %arg1: memref<1xi32, #tpu.memory_space<smem>>) -> (i32, i32, i32) {
    %c0_i32 = arith.constant 0 : i32
    %c0_i32_0 = arith.constant 0 : i32
    %c0_i32_1 = arith.constant 0 : i32
    %c0_i32_2 = arith.constant 0 : i32
    return %c0_i32, %c0_i32_0, %c0_i32_1 : i32, i32, i32
  }
}

</mosaic_0001>

<llo_original>
// kernel: tpu_custom_call.1
$region0: #{tpu_custom_call.1}
  #allocation0 [shape = 'u32[]', space=smem, size = 0x4, offset = 0x4, fixed_abs, tag = 'smem constant byte address 0x4 - core index']
  #allocation1 [shape = 'u32[72,128]{1,0:T(1,128)}', space=vmem, size = 0x9000, scoped, tag = 'internal scratch']
  #allocation2 [shape = 's32[1]{0}', space=sflag, size = 0x4, scoped, tag = 'scoped memory for tpu_custom_call.1']
  #allocation3 [shape = 's32[1]{0:T(128)S(6)}', space=smem, size = 0x200, scoped, tag = 'prefetched SMEM operand 0']
  %s0 = inlined_call_operand.<no memory space> [shape: s32[1], index: 0, kind: input, shape index: {}]
  %s1 = inlined_call_operand.vmem [shape: f32[1,2,2], index: 1, kind: input, shape index: {}]
  %s2 = inlined_call_operand.hbm [shape: f32[1,2,2], index: 2, kind: output, shape index: {}]
  %s3 = sld [smem:[#allocation0]]
  $region14: #{tpu_custom_call.1} parent=0
    _
  %s5 = ssub.s32 1, %s3
  %s6 = scalar_select 0, %s5, %s3
  %7 = sst [smem:[#allocation3]] %s0
  $region1: #{tpu_custom_call.1} parent=0
    #allocation4 [shape = 'u8[1024]{0}', space=vmem, size = 0x400, scoped, tag = 'output window, operand 0, single buffered']
    #allocation5 [shape = 's32[1]{0}', space=sflag, size = 0x4, scoped, tag = 'scoped memory for tpu_custom_call.1']
    %8 = vsyncpa [#allocation5], 0
    // Predicated region
    $region2: #{tpu_custom_call.1} parent=1 // pred_check
      _
    $region3: #{tpu_custom_call.1} parent=1 // pred_check_branch
      %10 = sbr.rel (0) target = $region5
    $region4: #{tpu_custom_call.1} parent=1 // pred_region
      _
    $region5: #{tpu_custom_call.1} parent=1 // pred_fallthru
      _
    %v11 = vlaneseq
    %v12 = vshrl.u32 %v11, 7
    %v13 = vmul.u32 %v12, 2
    %v14 = vlaneseq
    %v15 = vand.u32 %v14, 127
    %v16 = vadd.s32 %v13, %v15
    %s17 = smul.u32 0, 4
    %v18 = vstv %s17
    %v19 = vadd.s32 %v16, %v18
    %s20 = sld [smem:[#allocation3]]
    %s21 = smul.u32 %s20, 2654435769
    %s22 = sxor.u32 %s20, 2246822507
    %s23 = smul.u32 %s22, 3266489909
    %v24 = vstv %s21
    %v25 = vadd.s32 %v24, %v19
    %v26 = vshrl.u32 %v25, 16
    %v27 = vxor.u32 %v25, %v26
    %v28 = vmul.u32 %v27, 2146121005
    %v29 = vshrl.u32 %v28, 15
    %v30 = vxor.u32 %v28, %v29
    %v31 = vmul.u32 %v30, 2221713035
    %v32 = vshrl.u32 %v31, 16
    %v33 = vxor.u32 %v31, %v32
    %v34 = vstv %s23
    %v35 = vadd.s32 %v34, %v19
    %v36 = vshrl.u32 %v35, 16
    %v37 = vxor.u32 %v35, %v36
    %v38 = vmul.u32 %v37, 2146121005
    %v39 = vshrl.u32 %v38, 15
    %v40 = vxor.u32 %v38, %v39
    %v41 = vmul.u32 %v40, 2221713035
    %v42 = vshrl.u32 %v41, 16
    %v43 = vxor.u32 %v41, %v42
    %v44 = vand.u32 %v33, 65535
    %v45 = vadd.s32 %v44, 2147483648
    %vm47 = vcmp.lt.s32.totalorder %v45, 2147536076
    %v48 = vshrl.u32 %v33, 16
    %v49 = vadd.s32 %v48, 2147483648
    %vm51 = vcmp.lt.s32.totalorder %v49, 2147536076
    %v52 = vld [vmem:[%s1] sm:$0x3]
    %v53 = vmul.f32 %v52, 1.25
    %v54 = vsel %vm47, %v53, 0.0
    %v55 = vshrl.u32 %v43, 8
    %v56 = vcvt.s32.f32 %v55
    %v57 = vmul.f32 %v56, 5.9604645e-08
    %v58 = vadd.f32 %v54, %v57
    %v59 = vmul.f32 %v58, 1.25
    %v60 = vsel %vm51, %v59, 0.0
    %vm61 = vcmask 9216
    %62 = vst.msk [vmem:[#allocation4] sm:$0x3] %vm61, %v60
    // Predicated region
    $region6: #{tpu_custom_call.1} parent=1 // pred_check
      _
    $region7: #{tpu_custom_call.1} parent=1 // pred_check_branch
      %64 = sbr.rel (0) target = $region9
    $region8: #{tpu_custom_call.1} parent=1 // pred_region
      %66 = vsyncadd [#allocation5], 0
      %s68 = sshll.u32 [#allocation4], 4
      %s69 = int_to_ptr.vmem [resolvable:$true] %s68
      %s70 = sshll.u32 %s2, 4
      %s71 = int_to_ptr.hbm [resolvable:$true] %s70
      %73 = dma.vmem_to_hbm [thread:$0]  %s69, 32, %s71, [#allocation5]
    $region9: #{tpu_custom_call.1} parent=1 // pred_fallthru
      _
    // Predicated region
    $region10: #{tpu_custom_call.1} parent=1 // pred_check
      _
    $region11: #{tpu_custom_call.1} parent=1 // pred_check_branch
      %75 = sbr.rel (0) target = $region13
    $region12: #{tpu_custom_call.1} parent=1 // pred_region
      %77 = dma.done [#allocation5], 32
    $region13: #{tpu_custom_call.1} parent=1 // pred_fallthru
      _
    %78 = vsyncpa [#allocation5], 1

</llo_original>
